<compile_context>
chip_gen: v6e
topology: v6e:2x2x1
jax: 0.10.0
libtpu: 0.0.40
codegen_flags: <defaults>
</compile_context>

<pallas_src>
import jax
import jax.numpy as jnp
from jax.experimental import pallas as pl
from jax.experimental.pallas import tpu as pltpu

BN_EPS = 1e-5
_LANE = 128
_MiB = 1024 * 1024


def _round_up(n, m):
    return ((n + m - 1) // m) * m


# --------------------------------------------------------------------------- #
# Kernel: h = relu(x @ W1 + b1); h = relu(h @ W2' + b2'); o = (h @ W3' + b3')[:, :C]
# (BatchNorm already folded into W2'/b2' and W3'/b3' by prepare_params; x arrives
#  as f32 and is cast to the weight dtype in-kernel, hidden under the weight DMA.)
# --------------------------------------------------------------------------- #
def _mlp_kernel(x_ref, w1_ref, b1_ref, w2_ref, b2_ref, w3_ref, b3_ref, o_ref):
    x = x_ref[...].astype(w1_ref.dtype)

    h = jnp.dot(x, w1_ref[...], preferred_element_type=jnp.float32) + b1_ref[...]
    h = jnp.maximum(h, 0.0).astype(w2_ref.dtype)

    h = jnp.dot(h, w2_ref[...], preferred_element_type=jnp.float32) + b2_ref[...]
    h = jnp.maximum(h, 0.0).astype(w3_ref.dtype)

    out = jnp.dot(h, w3_ref[...], preferred_element_type=jnp.float32) + b3_ref[...]
    # W3'/b3' are lane-padded to a multiple of 128 for a dense MXU N stream; store
    # only the valid logit columns (no padded output tensor, no post-kernel slice).
    o_ref[...] = out[:, : o_ref.shape[1]].astype(o_ref.dtype)


# --------------------------------------------------------------------------- #
# Wrapper-side parameter preparation: BN fold + lane padding + bf16 cast.
# --------------------------------------------------------------------------- #
def prepare_params(params, *, compute_dtype=jnp.bfloat16):
    """Fold eval-mode BatchNorm into the adjacent Linear layers, pad the last matmul's
    N dim to a multiple of 128 (lane width), and cast matmul operands to
    `compute_dtype`. The fold itself is done in f32."""
    w1, b1 = params["w1"], params["b1"]          # [Din, 256], [1, 256]
    w2, b2 = params["w2"], params["b2"]          # [256, 128], [1, 128]
    w3, b3 = params["w3"], params["b3"]          # [128, C],   [1, C]

    # BN1 folded forward into Linear2: (h*s1 + t1) @ W2 = h @ (s1^T * W2) + t1 @ W2
    s1 = params["bn1_gamma"] * jax.lax.rsqrt(params["bn1_var"] + BN_EPS)   # [1, 256]
    t1 = params["bn1_beta"] - params["bn1_mean"] * s1
    w2f = w2 * s1.T
    b2f = t1 @ w2 + b2

    # BN2 folded forward into Linear3.
    s2 = params["bn2_gamma"] * jax.lax.rsqrt(params["bn2_var"] + BN_EPS)   # [1, 128]
    t2 = params["bn2_beta"] - params["bn2_mean"] * s2
    w3f = w3 * s2.T
    b3f = t2 @ w3 + b3

    din, h1 = w1.shape
    h2, c = w3f.shape

    # Din: pad only if not a multiple of 16 (bf16 sublane packing); for the common
    # case (e.g. 64) no pad -> x can be fed to the kernel completely untouched.
    din_p = _round_up(din, 16)
    if din_p != din:
        w1 = jnp.zeros((din_p, h1), jnp.float32).at[:din, :].set(w1)

    # Last matmul's N: lane-pad to a multiple of 128 for a dense MXU stream; the
    # padded columns are never stored (kernel slices before the store).
    c_p = _round_up(max(c, _LANE), _LANE)
    w3p = jnp.zeros((h2, c_p), jnp.float32).at[:, :c].set(w3f)
    b3p = jnp.zeros((1, c_p), jnp.float32).at[:, :c].set(b3f)

    return dict(
        w1=w1.astype(compute_dtype), b1=b1.astype(jnp.float32),
        w2=w2f.astype(compute_dtype), b2=b2f.astype(jnp.float32),
        w3=w3p.astype(compute_dtype), b3=b3p.astype(jnp.float32),
        input_dim=din, num_classes=c,
    )


# --------------------------------------------------------------------------- #
# Best-effort hardware query (safe fallbacks if the APIs are unavailable).
# --------------------------------------------------------------------------- #
def _tpu_caps():
    vmem_cap = 64 * _MiB          # conservative default (v7x physical VMEM)
    num_cores = 1                 # v5e / v6e: one TensorCore per chip
    try:
        info = pltpu.get_tpu_info()
        vmem_cap = int(getattr(info, "vmem_capacity_bytes", vmem_cap))
    except Exception:
        pass
    try:
        kind = jax.devices()[0].device_kind.lower()
        if "v7" in kind:          # only v7x has 2 TensorCores per chip
            num_cores = 2
    except Exception:
        pass
    return vmem_cap, num_cores


def _choose_block_b(B, requested, num_cores):
    """Pick the batch tile. Single grid step on single-TC chips whenever the batch
    fits the request; on 2-TC chips aim for an even number of equal 128-multiple
    tiles so both TensorCores get work."""
    if num_cores <= 1 or B < 2 * _LANE:
        if B <= requested:
            return B                                   # grid of 1
        return max(_LANE, (min(requested, B) // _LANE) * _LANE)
    half = _round_up((B + 1) // 2, _LANE)
    bb = min(requested, half)
    return max(_LANE, (bb // _LANE) * _LANE)


def mlp_classifier_forward(x, prepared, *, block_b=1024):
    """Fused forward pass. x: [B, input_dim] float32. Returns [B, num_classes] f32."""
    B = x.shape[0]
    w1, b1 = prepared["w1"], prepared["b1"]
    w2, b2 = prepared["w2"], prepared["b2"]
    w3, b3 = prepared["w3"], prepared["b3"]
    din_p, h1 = w1.shape
    h2, c_p = w3.shape
    num_classes = prepared["num_classes"]

    assert x.shape[1] == prepared["input_dim"]
    if x.shape[1] < din_p:
        # Only hit when input_dim is not a multiple of 16; common case is a no-op,
        # so x goes to the kernel untouched (the bf16 cast happens in-kernel).
        x = jnp.pad(x, ((0, 0), (0, din_p - x.shape[1])))

    vmem_cap, num_cores = _tpu_caps()
    block_b = _choose_block_b(B, block_b, num_cores)
    grid = (pl.cdiv(B, block_b),)

    def _fixed(shape):
        # weights / per-feature params: same block every grid step (no re-DMA)
        return pl.BlockSpec(shape, lambda i: (0, 0))

    in_specs = [
        pl.BlockSpec((block_b, din_p), lambda i: (i, 0)),    # x (f32, unpadded K)
        _fixed((din_p, h1)), _fixed((1, h1)),                # W1, b1
        _fixed((h1, h2)),    _fixed((1, h2)),                # W2' (BN1 folded), b2'
        _fixed((h2, c_p)),   _fixed((1, c_p)),               # W3' (BN2 folded), b3'
    ]
    # Output stored directly at the true class width (no padded tensor / post-slice).
    out_spec = pl.BlockSpec((block_b, num_classes), lambda i: (i, 0))

    # Explicit VMEM budget (double-buffered tiles) with headroom, clamped against the
    # chip's physical VMEM (64 MiB on v7x, 128 MiB on v5e/v6e) minus slack.
    bpe_w = w1.dtype.itemsize
    est = 2 * (block_b * din_p * 4 + block_b * num_classes * 4
               + (din_p * h1 + h1 * h2 + h2 * c_p) * bpe_w
               + (h1 + h2 + c_p) * 4)
    vmem_limit = int(max(16 * _MiB,
                         min(max(32 * _MiB, 3 * est), vmem_cap - 8 * _MiB)))

    out = pl.pallas_call(
        _mlp_kernel,
        out_shape=jax.ShapeDtypeStruct((B, num_classes), jnp.float32),
        grid_spec=pltpu.PrefetchScalarGridSpec(
            num_scalar_prefetch=0,
            grid=grid,
            in_specs=in_specs,
            out_specs=out_spec,
        ),
        compiler_params=pltpu.CompilerParams(
            dimension_semantics=("parallel",),
            vmem_limit_bytes=vmem_limit,
        ),
    )(x, w1, b1, w2, b2, w3, b3)

    return out


# --------------------------------------------------------------------------- #
# Parameter init (PyTorch default Linear init; weights stored [in, out]) + refs.
# --------------------------------------------------------------------------- #
def init_params(key, input_dim, num_classes):
    ks = jax.random.split(key, 10)

    def linear(kw, kb, fan_in, fan_out):
        bound = 1.0 / jnp.sqrt(fan_in)
        w = jax.random.uniform(kw, (fan_in, fan_out), jnp.float32, -bound, bound)
        b = jax.random.uniform(kb, (1, fan_out), jnp.float32, -bound, bound)
        return w, b

    w1, b1 = linear(ks[0], ks[1], input_dim, 256)
    w2, b2 = linear(ks[2], ks[3], 256, 128)
    w3, b3 = linear(ks[4], ks[5], 128, num_classes)

    return dict(
        w1=w1, b1=b1, w2=w2, b2=b2, w3=w3, b3=b3,
        bn1_gamma=jnp.ones((1, 256), jnp.float32),
        bn1_beta=jnp.zeros((1, 256), jnp.float32),
        bn1_mean=0.05 * jax.random.normal(ks[6], (1, 256), jnp.float32),
        bn1_var=jnp.abs(jax.random.normal(ks[7], (1, 256), jnp.float32)) + 0.5,
        bn2_gamma=jnp.ones((1, 128), jnp.float32),
        bn2_beta=jnp.zeros((1, 128), jnp.float32),
        bn2_mean=0.05 * jax.random.normal(ks[8], (1, 128), jnp.float32),
        bn2_var=jnp.abs(jax.random.normal(ks[9], (1, 128), jnp.float32)) + 0.5,
    )


def reference_forward(x, p):
    """Pure-JAX reference with original (unfolded) eval-mode PyTorch semantics."""
    h = x @ p["w1"] + p["b1"]
    h = jnp.maximum(h, 0.0)
    h = (h - p["bn1_mean"]) / jnp.sqrt(p["bn1_var"] + BN_EPS) * p["bn1_gamma"] + p["bn1_beta"]
    h = h @ p["w2"] + p["b2"]
    h = jnp.maximum(h, 0.0)
    h = (h - p["bn2_mean"]) / jnp.sqrt(p["bn2_var"] + BN_EPS) * p["bn2_gamma"] + p["bn2_beta"]
    return h @ p["w3"] + p["b3"]


def reference_folded(x, prepared):
    """Pure-JAX replica of exactly what the kernel computes (same fold/pad/dtypes)."""
    w1 = prepared["w1"]
    din_p = w1.shape[0]
    if x.shape[1] < din_p:
        x = jnp.pad(x, ((0, 0), (0, din_p - x.shape[1])))
    h = jnp.dot(x.astype(w1.dtype), w1, preferred_element_type=jnp.float32) + prepared["b1"]
    h = jnp.maximum(h, 0.0).astype(prepared["w2"].dtype)
    h = jnp.dot(h, prepared["w2"], preferred_element_type=jnp.float32) + prepared["b2"]
    h = jnp.maximum(h, 0.0).astype(prepared["w3"].dtype)
    out = jnp.dot(h, prepared["w3"], preferred_element_type=jnp.float32) + prepared["b3"]
    return out[:, :prepared["num_classes"]]


if __name__ == "__main__":
    key = jax.random.PRNGKey(0)
    k_x, k_p = jax.random.split(key)

    B, INPUT_DIM, NUM_CLASSES = 256, 64, 10
    x = jax.random.normal(k_x, (B, INPUT_DIM), jnp.float32)
    params = init_params(k_p, INPUT_DIM, NUM_CLASSES)

    # 1) Check the BN-fold + padding transformation is numerically faithful (all-f32).
    ref = reference_forward(x, params)
    prepared_f32 = prepare_params(params, compute_dtype=jnp.float32)
    ref_folded_f32 = reference_folded(x, prepared_f32)
    assert jnp.allclose(ref_folded_f32, ref, atol=1e-4, rtol=1e-4), "BN fold mismatch"

    # 2) Run the fused bf16-operand kernel (single grid step on v5e/v6e; even 2-way
    #    batch split only on 2-TensorCore v7x).
    prepared = prepare_params(params, compute_dtype=jnp.bfloat16)
    out = mlp_classifier_forward(x, prepared, block_b=1024)
    out = jax.block_until_ready(out)

    assert out.shape == (B, NUM_CLASSES)
    ref_bf16 = reference_folded(x, prepared)
    assert jnp.allclose(out, ref_bf16, atol=2e-3, rtol=2e-3), "kernel mismatch vs bf16 reference"
    assert jnp.allclose(out, ref, atol=1e-1, rtol=1e-1), "kernel drifted from f32 reference"

    print("KERNEL_OK")
</pallas_src>

<mosaic_0001>
module attributes {stable_mosaic.version = 11 : i64} {
  func.func @_mlp_kernel(%arg0: i32, %arg1: memref<256x64xf32, #tpu.memory_space<vmem>>, %arg2: memref<64x256xbf16, #tpu.memory_space<vmem>>, %arg3: memref<1x256xf32, #tpu.memory_space<vmem>>, %arg4: memref<256x128xbf16, #tpu.memory_space<vmem>>, %arg5: memref<1x128xf32, #tpu.memory_space<vmem>>, %arg6: memref<128x128xbf16, #tpu.memory_space<vmem>>, %arg7: memref<1x128xf32, #tpu.memory_space<vmem>>, %arg8: memref<256x10xf32, #tpu.memory_space<vmem>>) attributes {dimension_semantics = [#tpu.dimension_semantics<parallel>], iteration_bounds = array<i64: 1>, scalar_prefetch = 0 : i64, scratch_operands = 0 : i64, tpu.core_type = #tpu.core_type<tc>, window_params = [{transform_indices = @transform_0, window_bounds = array<i64: 256, 64>}, {pipeline_mode = #tpu.pipeline_mode<synchronous>, transform_indices = @transform_1, window_bounds = array<i64: 64, 256>}, {pipeline_mode = #tpu.pipeline_mode<synchronous>, transform_indices = @transform_2, window_bounds = array<i64: 1, 256>}, {pipeline_mode = #tpu.pipeline_mode<synchronous>, transform_indices = @transform_3, window_bounds = array<i64: 256, 128>}, {pipeline_mode = #tpu.pipeline_mode<synchronous>, transform_indices = @transform_4, window_bounds = array<i64: 1, 128>}, {pipeline_mode = #tpu.pipeline_mode<synchronous>, transform_indices = @transform_5, window_bounds = array<i64: 128, 128>}, {pipeline_mode = #tpu.pipeline_mode<synchronous>, transform_indices = @transform_6, window_bounds = array<i64: 1, 128>}, {transform_indices = @transform_7, window_bounds = array<i64: 256, 10>}]} {
    %c0 = arith.constant 0 : index
    %c0_0 = arith.constant 0 : index
    %0 = vector.load %arg1[%c0, %c0_0] : memref<256x64xf32, #tpu.memory_space<vmem>>, vector<256x64xf32>
    %1 = arith.truncf %0 : vector<256x64xf32> to vector<256x64xbf16>
    %c0_1 = arith.constant 0 : index
    %c0_2 = arith.constant 0 : index
    %2 = vector.load %arg2[%c0_1, %c0_2] : memref<64x256xbf16, #tpu.memory_space<vmem>>, vector<64x256xbf16>
    %cst = arith.constant dense<0.000000e+00> : vector<256x256xf32>
    %3 = tpu.matmul %1, %2, %cst {dimension_numbers = #tpu.dot_dimension_numbers<[1], [0], [0], [1], [0, 0, 1, 1], [], []>} : vector<256x64xbf16>, vector<64x256xbf16>, vector<256x256xf32> -> vector<256x256xf32>
    %c0_3 = arith.constant 0 : index
    %c0_4 = arith.constant 0 : index
    %4 = vector.load %arg3[%c0_3, %c0_4] : memref<1x256xf32, #tpu.memory_space<vmem>>, vector<1x256xf32>
    %5 = vector.broadcast %4 : vector<1x256xf32> to vector<256x256xf32>
    %6 = arith.addf %3, %5 : vector<256x256xf32>
    %cst_5 = arith.constant 0.000000e+00 : f32
    %7 = vector.broadcast %cst_5 : f32 to vector<256x256xf32>
    %8 = arith.maximumf %6, %7 : vector<256x256xf32>
    %9 = arith.truncf %8 : vector<256x256xf32> to vector<256x256xbf16>
    %c0_6 = arith.constant 0 : index
    %c0_7 = arith.constant 0 : index
    %10 = vector.load %arg4[%c0_6, %c0_7] : memref<256x128xbf16, #tpu.memory_space<vmem>>, vector<256x128xbf16>
    %cst_8 = arith.constant dense<0.000000e+00> : vector<256x128xf32>
    %11 = tpu.matmul %9, %10, %cst_8 {dimension_numbers = #tpu.dot_dimension_numbers<[1], [0], [0], [1], [0, 0, 1, 1], [], []>} : vector<256x256xbf16>, vector<256x128xbf16>, vector<256x128xf32> -> vector<256x128xf32>
    %c0_9 = arith.constant 0 : index
    %c0_10 = arith.constant 0 : index
    %12 = vector.load %arg5[%c0_9, %c0_10] : memref<1x128xf32, #tpu.memory_space<vmem>>, vector<1x128xf32>
    %13 = vector.broadcast %12 : vector<1x128xf32> to vector<256x128xf32>
    %14 = arith.addf %11, %13 : vector<256x128xf32>
    %cst_11 = arith.constant 0.000000e+00 : f32
    %15 = vector.broadcast %cst_11 : f32 to vector<256x128xf32>
    %16 = arith.maximumf %14, %15 : vector<256x128xf32>
    %17 = arith.truncf %16 : vector<256x128xf32> to vector<256x128xbf16>
    %c0_12 = arith.constant 0 : index
    %c0_13 = arith.constant 0 : index
    %18 = vector.load %arg6[%c0_12, %c0_13] : memref<128x128xbf16, #tpu.memory_space<vmem>>, vector<128x128xbf16>
    %cst_14 = arith.constant dense<0.000000e+00> : vector<256x128xf32>
    %19 = tpu.matmul %17, %18, %cst_14 {dimension_numbers = #tpu.dot_dimension_numbers<[1], [0], [0], [1], [0, 0, 1, 1], [], []>} : vector<256x128xbf16>, vector<128x128xbf16>, vector<256x128xf32> -> vector<256x128xf32>
    %c0_15 = arith.constant 0 : index
    %c0_16 = arith.constant 0 : index
    %20 = vector.load %arg7[%c0_15, %c0_16] : memref<1x128xf32, #tpu.memory_space<vmem>>, vector<1x128xf32>
    %21 = vector.broadcast %20 : vector<1x128xf32> to vector<256x128xf32>
    %22 = arith.addf %19, %21 : vector<256x128xf32>
    %23 = vector.extract_strided_slice %22 {offsets = [0, 0], sizes = [256, 10], strides = [1, 1]} : vector<256x128xf32> to vector<256x10xf32>
    %c0_17 = arith.constant 0 : index
    %c0_18 = arith.constant 0 : index
    %24 = vector.load %arg8[%c0_17, %c0_18] : memref<256x10xf32, #tpu.memory_space<vmem>>, vector<256x10xf32>
    tpu.vector_store %arg8[%c0_17, %c0_18], %23 {strides = array<i32>} : memref<256x10xf32, #tpu.memory_space<vmem>>, vector<256x10xf32>,
    return
  }
  func.func @transform_0(%arg0: i32) -> (i32, i32) {
    %c0_i32 = arith.constant 0 : i32
    %c0_i32_0 = arith.constant 0 : i32
    return %arg0, %c0_i32 : i32, i32
  }
  func.func @transform_1(%arg0: i32) -> (i32, i32) {
    %c0_i32 = arith.constant 0 : i32
    %c0_i32_0 = arith.constant 0 : i32
    %c0_i32_1 = arith.constant 0 : i32
    return %c0_i32, %c0_i32_0 : i32, i32
  }
  func.func @transform_2(%arg0: i32) -> (i32, i32) {
    %c0_i32 = arith.constant 0 : i32
    %c0_i32_0 = arith.constant 0 : i32
    %c0_i32_1 = arith.constant 0 : i32
    return %c0_i32, %c0_i32_0 : i32, i32
  }
  func.func @transform_3(%arg0: i32) -> (i32, i32) {
    %c0_i32 = arith.constant 0 : i32
    %c0_i32_0 = arith.constant 0 : i32
    %c0_i32_1 = arith.constant 0 : i32
    return %c0_i32, %c0_i32_0 : i32, i32
  }
  func.func @transform_4(%arg0: i32) -> (i32, i32) {
    %c0_i32 = arith.constant 0 : i32
    %c0_i32_0 = arith.constant 0 : i32
    %c0_i32_1 = arith.constant 0 : i32
    return %c0_i32, %c0_i32_0 : i32, i32
  }
  func.func @transform_5(%arg0: i32) -> (i32, i32) {
    %c0_i32 = arith.constant 0 : i32
    %c0_i32_0 = arith.constant 0 : i32
    %c0_i32_1 = arith.constant 0 : i32
    return %c0_i32, %c0_i32_0 : i32, i32
  }
  func.func @transform_6(%arg0: i32) -> (i32, i32) {
    %c0_i32 = arith.constant 0 : i32
    %c0_i32_0 = arith.constant 0 : i32
    %c0_i32_1 = arith.constant 0 : i32
    return %c0_i32, %c0_i32_0 : i32, i32
  }
  func.func @transform_7(%arg0: i32) -> (i32, i32) {
    %c0_i32 = arith.constant 0 : i32
    %c0_i32_0 = arith.constant 0 : i32
    return %arg0, %c0_i32 : i32, i32
  }
}

</mosaic_0001>

<llo_original>
// kernel: tpu_custom_call.1
$region0: #{tpu_custom_call.1}
  #allocation0 [shape = 'u32[]', space=smem, size = 0x4, offset = 0x4, fixed_abs, tag = 'smem constant byte address 0x4 - core index']
  #allocation1 [shape = 'u32[144,128]{1,0:T(1,128)}', space=vmem, size = 0x12000, scoped, tag = 'internal scratch']
  %s0 = inlined_call_operand.vmem [shape: f32[256,64], index: 0, kind: input, shape index: {}]
  %s1 = inlined_call_operand.vmem [shape: bf16[64,256], index: 1, kind: input, shape index: {}]
  %s2 = inlined_call_operand.vmem [shape: f32[1,256], index: 2, kind: input, shape index: {}]
  %s3 = inlined_call_operand.vmem [shape: bf16[256,128], index: 3, kind: input, shape index: {}]
  %s4 = inlined_call_operand.vmem [shape: f32[1,128], index: 4, kind: input, shape index: {}]
  %s5 = inlined_call_operand.vmem [shape: bf16[128,128], index: 5, kind: input, shape index: {}]
  %s6 = inlined_call_operand.vmem [shape: f32[1,128], index: 6, kind: input, shape index: {}]
  %s7 = inlined_call_operand.vmem [shape: f32[256,10], index: 7, kind: output, shape index: {}]
  %s8 = sld [smem:[#allocation0]]
  $region38: #{tpu_custom_call.1} parent=0
    _
  %s10 = ssub.s32 1, %s8
  %s11 = scalar_select 0, %s10, %s8
  // Predicated region
  $region2: #{tpu_custom_call.1} parent=0 // pred_check
    _
  $region3: #{tpu_custom_call.1} parent=0 // pred_check_branch
    %13 = sbr.rel (0) target = $region5
  $region4: #{tpu_custom_call.1} parent=0 // pred_region
    _
  $region5: #{tpu_custom_call.1} parent=0 // pred_fallthru
    _
  // Predicated region
  $region6: #{tpu_custom_call.1} parent=0 // pred_check
    _
  $region7: #{tpu_custom_call.1} parent=0 // pred_check_branch
    %15 = sbr.rel (0) target = $region9
  $region8: #{tpu_custom_call.1} parent=0 // pred_region
    _
  $region9: #{tpu_custom_call.1} parent=0 // pred_fallthru
    _
  // Predicated region
  $region10: #{tpu_custom_call.1} parent=0 // pred_check
    _
  $region11: #{tpu_custom_call.1} parent=0 // pred_check_branch
    %17 = sbr.rel (0) target = $region13
  $region12: #{tpu_custom_call.1} parent=0 // pred_region
    _
  $region13: #{tpu_custom_call.1} parent=0 // pred_fallthru
    _
  // Predicated region
  $region14: #{tpu_custom_call.1} parent=0 // pred_check
    _
  $region15: #{tpu_custom_call.1} parent=0 // pred_check_branch
    %19 = sbr.rel (0) target = $region17
  $region16: #{tpu_custom_call.1} parent=0 // pred_region
    _
  $region17: #{tpu_custom_call.1} parent=0 // pred_fallthru
    _
  // Predicated region
  $region18: #{tpu_custom_call.1} parent=0 // pred_check
    _
  $region19: #{tpu_custom_call.1} parent=0 // pred_check_branch
    %21 = sbr.rel (0) target = $region21
  $region20: #{tpu_custom_call.1} parent=0 // pred_region
    _
  $region21: #{tpu_custom_call.1} parent=0 // pred_fallthru
    _
  // Predicated region
  $region22: #{tpu_custom_call.1} parent=0 // pred_check
    _
  $region23: #{tpu_custom_call.1} parent=0 // pred_check_branch
    %23 = sbr.rel (0) target = $region25
  $region24: #{tpu_custom_call.1} parent=0 // pred_region
    _
  $region25: #{tpu_custom_call.1} parent=0 // pred_fallthru
    _
  // Predicated region
  $region26: #{tpu_custom_call.1} parent=0 // pred_check
    _
  $region27: #{tpu_custom_call.1} parent=0 // pred_check_branch
    %25 = sbr.rel (0) target = $region29
  $region28: #{tpu_custom_call.1} parent=0 // pred_region
    _
  $region29: #{tpu_custom_call.1} parent=0 // pred_fallthru
    _
  %v27 = vld [vmem:[%s0] sm:$0xff]
  %v28 = vld [vmem:[%s0 + $0x8] sm:$0xff]
  %v29 = vld [vmem:[%s0 + $0x10] sm:$0xff]
  %v30 = vld [vmem:[%s0 + $0x18] sm:$0xff]
  %v31 = vld [vmem:[%s0 + $0x20] sm:$0xff]
  %v32 = vld [vmem:[%s0 + $0x28] sm:$0xff]
  %v33 = vld [vmem:[%s0 + $0x30] sm:$0xff]
  %v34 = vld [vmem:[%s0 + $0x38] sm:$0xff]
  %v35 = vld [vmem:[%s0 + $0x40] sm:$0xff]
  %v36 = vld [vmem:[%s0 + $0x48] sm:$0xff]
  %v37 = vld [vmem:[%s0 + $0x50] sm:$0xff]
  %v38 = vld [vmem:[%s0 + $0x58] sm:$0xff]
  %v39 = vld [vmem:[%s0 + $0x60] sm:$0xff]
  %v40 = vld [vmem:[%s0 + $0x68] sm:$0xff]
  %v41 = vld [vmem:[%s0 + $0x70] sm:$0xff]
  %v42 = vld [vmem:[%s0 + $0x78] sm:$0xff]
  %v43 = vld [vmem:[%s0 + $0x80] sm:$0xff]
  %v44 = vld [vmem:[%s0 + $0x88] sm:$0xff]
  %v45 = vld [vmem:[%s0 + $0x90] sm:$0xff]
  %v46 = vld [vmem:[%s0 + $0x98] sm:$0xff]
  %v47 = vld [vmem:[%s0 + $0xa0] sm:$0xff]
  %v48 = vld [vmem:[%s0 + $0xa8] sm:$0xff]
  %v49 = vld [vmem:[%s0 + $0xb0] sm:$0xff]
  %v50 = vld [vmem:[%s0 + $0xb8] sm:$0xff]
  %v51 = vld [vmem:[%s0 + $0xc0] sm:$0xff]
  %v52 = vld [vmem:[%s0 + $0xc8] sm:$0xff]
  %v53 = vld [vmem:[%s0 + $0xd0] sm:$0xff]
  %v54 = vld [vmem:[%s0 + $0xd8] sm:$0xff]
  %v55 = vld [vmem:[%s0 + $0xe0] sm:$0xff]
  %v56 = vld [vmem:[%s0 + $0xe8] sm:$0xff]
  %v57 = vld [vmem:[%s0 + $0xf0] sm:$0xff]
  %v58 = vld [vmem:[%s0 + $0xf8] sm:$0xff]
  %v59 = vpack.c.bf16 %v28, %v27
  %v60 = vpack.c.bf16 %v30, %v29
  %v61 = vpack.c.bf16 %v32, %v31
  %v62 = vpack.c.bf16 %v34, %v33
  %v63 = vpack.c.bf16 %v36, %v35
  %v64 = vpack.c.bf16 %v38, %v37
  %v65 = vpack.c.bf16 %v40, %v39
  %v66 = vpack.c.bf16 %v42, %v41
  %v67 = vpack.c.bf16 %v44, %v43
  %v68 = vpack.c.bf16 %v46, %v45
  %v69 = vpack.c.bf16 %v48, %v47
  %v70 = vpack.c.bf16 %v50, %v49
  %v71 = vpack.c.bf16 %v52, %v51
  %v72 = vpack.c.bf16 %v54, %v53
  %v73 = vpack.c.bf16 %v56, %v55
  %v74 = vpack.c.bf16 %v58, %v57
  %v75 = vld [vmem:[%s1] sm:$0xff]
  %v76 = vld [vmem:[%s1 + $0x8] sm:$0xff]
  %v77 = vld [vmem:[%s1 + $0x10] sm:$0xff]
  %v78 = vld [vmem:[%s1 + $0x18] sm:$0xff]
  %v79 = vld [vmem:[%s1 + $0x20] sm:$0xff]
  %v80 = vld [vmem:[%s1 + $0x28] sm:$0xff]
  %v81 = vld [vmem:[%s1 + $0x30] sm:$0xff]
  %v82 = vld [vmem:[%s1 + $0x38] sm:$0xff]
  %v83 = vld [vmem:[%s2] sm:$0x3]
  %v85 = vlaneseq
  %v86 = vshrl.u32 %v85, 7
  %v87 = vsub.s32 0, %v86
  %v88 = vrot.slane %v83, %v87
  %v89 = vlaneseq
  %v90 = vshrl.u32 %v89, 7
  %v91 = vsub.s32 1, %v90
  %v92 = vrot.slane %v83, %v91
  %v103 = vunpack.c.l.b16 %v75
  %v104 = vunpack.c.h.b16 %v75
  %v105 = vunpack.c.l.b16 %v76
  %v106 = vunpack.c.h.b16 %v76
  %v107 = vunpack.c.l.b16 %v77
  %v108 = vunpack.c.h.b16 %v77
  %v109 = vunpack.c.l.b16 %v78
  %v110 = vunpack.c.h.b16 %v78
  %v111 = vunpack.c.l.b16 %v79
  %v112 = vunpack.c.h.b16 %v79
  %v113 = vunpack.c.l.b16 %v80
  %v114 = vunpack.c.h.b16 %v80
  %v115 = vunpack.c.l.b16 %v81
  %v116 = vunpack.c.h.b16 %v81
  %v117 = vunpack.c.l.b16 %v82
  %v118 = vunpack.c.h.b16 %v82
  %v119 = vpack.c.b16 %v105, %v103
  %v120 = vpack.c.b16 %v106, %v104
  %v121 = vpack.c.b16 %v109, %v107
  %v122 = vpack.c.b16 %v110, %v108
  %v123 = vpack.c.b16 %v113, %v111
  %v124 = vpack.c.b16 %v114, %v112
  %v125 = vpack.c.b16 %v117, %v115
  %v126 = vpack.c.b16 %v118, %v116
  %vm135 = vcmask 523264
  %v137 = vsel %vm135, %v59, 0
  %v140 = vsel %vm135, %v60, 0
  %v143 = vsel %vm135, %v61, 0
  %v146 = vsel %vm135, %v62, 0
  %v149 = vsel %vm135, %v63, 0
  %v152 = vsel %vm135, %v64, 0
  %v155 = vsel %vm135, %v65, 0
  %v158 = vsel %vm135, %v66, 0
  %v161 = vsel %vm135, %v67, 0
  %v164 = vsel %vm135, %v68, 0
  %v167 = vsel %vm135, %v69, 0
  %v170 = vsel %vm135, %v70, 0
  %v173 = vsel %vm135, %v71, 0
  %v176 = vsel %vm135, %v72, 0
  %v179 = vsel %vm135, %v73, 0
  %v182 = vsel %vm135, %v74, 0
  %184 = vmatprep.subr.bf16.mxu0 0
  %185 = vmatpush1.bf16.msra.mxu0 0
  %186 = vmatprep.subr.bf16.mxu0 0
  %187 = vmatpush1.bf16.msra.mxu0 0
  %188 = vmatprep.subr.bf16.mxu0 0
  %189 = vmatpush1.bf16.msra.mxu0 0
  %190 = vmatprep.subr.bf16.mxu0 0
  %191 = vmatpush1.bf16.msra.mxu0 0
  %192 = vmatprep.subr.bf16.mxu0 %v126
  %193 = vmatpush1.bf16.msra.mxu0 %v125
  %194 = vmatprep.subr.bf16.mxu0 %v124
  %195 = vmatpush1.bf16.msra.mxu0 %v123
  %196 = vmatprep.subr.bf16.mxu0 %v122
  %197 = vmatpush1.bf16.msra.mxu0 %v121
  %198 = vmatprep.subr.bf16.mxu0 %v120
  %199 = vmatpush1.bf16.msra.mxu0 %v119
  %200 = vmatprep.subr.bf16.mxu0 0
  %201 = vmatpush2.bf16.msra.mxu0 0
  %202 = vmatprep.subr.bf16.mxu0 0
  %203 = vmatpush2.bf16.msra.mxu0 0
  %204 = vmatprep.subr.bf16.mxu0 0
  %205 = vmatpush2.bf16.msra.mxu0 0
  %206 = vmatprep.subr.bf16.mxu0 0
  %207 = vmatpush2.bf16.msra.mxu0 0
  %208 = vmatprep.subr.bf16.mxu0 0
  %209 = vmatpush2.bf16.msra.mxu0 0
  %210 = vmatprep.subr.bf16.mxu0 0
  %211 = vmatpush2.bf16.msra.mxu0 0
  %212 = vmatprep.subr.bf16.mxu0 0
  %213 = vmatpush2.bf16.msra.mxu0 0
  %214 = vmatprep.subr.bf16.mxu0 0
  %215 = vmatpush2.bf16.msra.mxu0 0
  %216 = vmatprep.mubr.bf16.mxu0 0
  %217 = vmatmul.mubr.bf16.gmra.mxu0 %v137
  %v218 = vpop.f32.mrf.mxu0
  %v219 = vadd.f32 %v88, %v218
  %v220 = vpop.f32.mrf.mxu0
  %v221 = vadd.f32 %v92, %v220
  %v222 = vpop.f32.mrf.mxu0
  %v223 = vadd.f32 %v88, %v222
  %v224 = vpop.f32.mrf.mxu0
  %v225 = vadd.f32 %v92, %v224
  %226 = vmatprep.mubr.bf16.mxu0 0
  %227 = vmatmul.mubr.bf16.gmra.mxu0 %v140
  %v228 = vpop.f32.mrf.mxu0
  %v229 = vadd.f32 %v88, %v228
  %v230 = vpop.f32.mrf.mxu0
  %v231 = vadd.f32 %v92, %v230
  %v232 = vpop.f32.mrf.mxu0
  %v233 = vadd.f32 %v88, %v232
  %v234 = vpop.f32.mrf.mxu0
  %v235 = vadd.f32 %v92, %v234
  %236 = vmatprep.mubr.bf16.mxu0 0
  %237 = vmatmul.mubr.bf16.gmra.mxu0 %v143
  %v238 = vpop.f32.mrf.mxu0
  %v239 = vadd.f32 %v88, %v238
  %v240 = vpop.f32.mrf.mxu0
  %v241 = vadd.f32 %v92, %v240
  %v242 = vpop.f32.mrf.mxu0
  %v243 = vadd.f32 %v88, %v242
  %v244 = vpop.f32.mrf.mxu0
  %v245 = vadd.f32 %v92, %v244
  %246 = vmatprep.mubr.bf16.mxu0 0
  %247 = vmatmul.mubr.bf16.gmra.mxu0 %v146
  %v248 = vpop.f32.mrf.mxu0
  %v249 = vadd.f32 %v88, %v248
  %v250 = vpop.f32.mrf.mxu0
  %v251 = vadd.f32 %v92, %v250
  %v252 = vpop.f32.mrf.mxu0
  %v253 = vadd.f32 %v88, %v252
  %v254 = vpop.f32.mrf.mxu0
  %v255 = vadd.f32 %v92, %v254
  %256 = vmatprep.mubr.bf16.mxu0 0
  %257 = vmatmul.mubr.bf16.gmra.mxu0 %v149
  %v258 = vpop.f32.mrf.mxu0
  %v259 = vadd.f32 %v88, %v258
  %v260 = vpop.f32.mrf.mxu0
  %v261 = vadd.f32 %v92, %v260
  %v262 = vpop.f32.mrf.mxu0
  %v263 = vadd.f32 %v88, %v262
  %v264 = vpop.f32.mrf.mxu0
  %v265 = vadd.f32 %v92, %v264
  %266 = vmatprep.mubr.bf16.mxu0 0
  %267 = vmatmul.mubr.bf16.gmra.mxu0 %v152
  %v268 = vpop.f32.mrf.mxu0
  %v269 = vadd.f32 %v88, %v268
  %v270 = vpop.f32.mrf.mxu0
  %v271 = vadd.f32 %v92, %v270
  %v272 = vpop.f32.mrf.mxu0
  %v273 = vadd.f32 %v88, %v272
  %v274 = vpop.f32.mrf.mxu0
  %v275 = vadd.f32 %v92, %v274
  %276 = vmatprep.mubr.bf16.mxu0 0
  %277 = vmatmul.mubr.bf16.gmra.mxu0 %v155
  %v278 = vpop.f32.mrf.mxu0
  %v279 = vadd.f32 %v88, %v278
  %v280 = vpop.f32.mrf.mxu0
  %v281 = vadd.f32 %v92, %v280
  %v282 = vpop.f32.mrf.mxu0
  %v283 = vadd.f32 %v88, %v282
  %v284 = vpop.f32.mrf.mxu0
  %v285 = vadd.f32 %v92, %v284
  %286 = vmatprep.mubr.bf16.mxu0 0
  %287 = vmatmul.mubr.bf16.gmra.mxu0 %v158
  %v288 = vpop.f32.mrf.mxu0
  %v289 = vadd.f32 %v88, %v288
  %v290 = vpop.f32.mrf.mxu0
  %v291 = vadd.f32 %v92, %v290
  %v292 = vpop.f32.mrf.mxu0
  %v293 = vadd.f32 %v88, %v292
  %v294 = vpop.f32.mrf.mxu0
  %v295 = vadd.f32 %v92, %v294
  %296 = vmatprep.mubr.bf16.mxu0 0
  %297 = vmatmul.mubr.bf16.gmra.mxu0 %v161
  %v298 = vpop.f32.mrf.mxu0
  %v299 = vadd.f32 %v88, %v298
  %v300 = vpop.f32.mrf.mxu0
  %v301 = vadd.f32 %v92, %v300
  %v302 = vpop.f32.mrf.mxu0
  %v303 = vadd.f32 %v88, %v302
  %v304 = vpop.f32.mrf.mxu0
  %v305 = vadd.f32 %v92, %v304
  %306 = vmatprep.mubr.bf16.mxu0 0
  %307 = vmatmul.mubr.bf16.gmra.mxu0 %v164
  %v308 = vpop.f32.mrf.mxu0
  %v309 = vadd.f32 %v88, %v308
  %v310 = vpop.f32.mrf.mxu0
  %v311 = vadd.f32 %v92, %v310
  %v312 = vpop.f32.mrf.mxu0
  %v313 = vadd.f32 %v88, %v312
  %v314 = vpop.f32.mrf.mxu0
  %v315 = vadd.f32 %v92, %v314
  %316 = vmatprep.mubr.bf16.mxu0 0
  %317 = vmatmul.mubr.bf16.gmra.mxu0 %v167
  %v318 = vpop.f32.mrf.mxu0
  %v319 = vadd.f32 %v88, %v318
  %v320 = vpop.f32.mrf.mxu0
  %v321 = vadd.f32 %v92, %v320
  %v322 = vpop.f32.mrf.mxu0
  %v323 = vadd.f32 %v88, %v322
  %v324 = vpop.f32.mrf.mxu0
  %v325 = vadd.f32 %v92, %v324
  %326 = vmatprep.mubr.bf16.mxu0 0
  %327 = vmatmul.mubr.bf16.gmra.mxu0 %v170
  %v328 = vpop.f32.mrf.mxu0
  %v329 = vadd.f32 %v88, %v328
  %v330 = vpop.f32.mrf.mxu0
  %v331 = vadd.f32 %v92, %v330
  %v332 = vpop.f32.mrf.mxu0
  %v333 = vadd.f32 %v88, %v332
  %v334 = vpop.f32.mrf.mxu0
  %v335 = vadd.f32 %v92, %v334
  %336 = vmatprep.mubr.bf16.mxu0 0
  %337 = vmatmul.mubr.bf16.gmra.mxu0 %v173
  %v338 = vpop.f32.mrf.mxu0
  %v339 = vadd.f32 %v88, %v338
  %v340 = vpop.f32.mrf.mxu0
  %v341 = vadd.f32 %v92, %v340
  %v342 = vpop.f32.mrf.mxu0
  %v343 = vadd.f32 %v88, %v342
  %v344 = vpop.f32.mrf.mxu0
  %v345 = vadd.f32 %v92, %v344
  %346 = vmatprep.mubr.bf16.mxu0 0
  %347 = vmatmul.mubr.bf16.gmra.mxu0 %v176
  %v348 = vpop.f32.mrf.mxu0
  %v349 = vadd.f32 %v88, %v348
  %v350 = vpop.f32.mrf.mxu0
  %v351 = vadd.f32 %v92, %v350
  %v352 = vpop.f32.mrf.mxu0
  %v353 = vadd.f32 %v88, %v352
  %v354 = vpop.f32.mrf.mxu0
  %v355 = vadd.f32 %v92, %v354
  %356 = vmatprep.mubr.bf16.mxu0 0
  %357 = vmatmul.mubr.bf16.gmra.mxu0 %v179
  %v358 = vpop.f32.mrf.mxu0
  %v359 = vadd.f32 %v88, %v358
  %v360 = vpop.f32.mrf.mxu0
  %v361 = vadd.f32 %v92, %v360
  %v362 = vpop.f32.mrf.mxu0
  %v363 = vadd.f32 %v88, %v362
  %v364 = vpop.f32.mrf.mxu0
  %v365 = vadd.f32 %v92, %v364
  %366 = vmatprep.mubr.bf16.mxu0 0
  %367 = vmatmul.mubr.bf16.gmra.mxu0 %v182
  %v368 = vpop.f32.mrf.mxu0
  %v369 = vadd.f32 %v88, %v368
  %v370 = vpop.f32.mrf.mxu0
  %v371 = vadd.f32 %v92, %v370
  %v372 = vpop.f32.mrf.mxu0
  %v373 = vadd.f32 %v88, %v372
  %v374 = vpop.f32.mrf.mxu0
  %v375 = vadd.f32 %v92, %v374
  %376 = vdwg.mxu0
  %v377 = vmax.f32 %v219, 0.0
  %v378 = vmax.f32 %v221, 0.0
  %v379 = vmax.f32 %v223, 0.0
  %v380 = vmax.f32 %v225, 0.0
  %v381 = vmax.f32 %v229, 0.0
  %v382 = vmax.f32 %v231, 0.0
  %v383 = vmax.f32 %v233, 0.0
  %v384 = vmax.f32 %v235, 0.0
  %v385 = vmax.f32 %v239, 0.0
  %v386 = vmax.f32 %v241, 0.0
  %v387 = vmax.f32 %v243, 0.0
  %v388 = vmax.f32 %v245, 0.0
  %v389 = vmax.f32 %v249, 0.0
  %v390 = vmax.f32 %v251, 0.0
  %v391 = vmax.f32 %v253, 0.0
  %v392 = vmax.f32 %v255, 0.0
  %v393 = vmax.f32 %v259, 0.0
  %v394 = vmax.f32 %v261, 0.0
  %v395 = vmax.f32 %v263, 0.0
  %v396 = vmax.f32 %v265, 0.0
  %v397 = vmax.f32 %v269, 0.0
  %v398 = vmax.f32 %v271, 0.0
  %v399 = vmax.f32 %v273, 0.0
  %v400 = vmax.f32 %v275, 0.0
  %v401 = vmax.f32 %v279, 0.0
  %v402 = vmax.f32 %v281, 0.0
  %v403 = vmax.f32 %v283, 0.0
  %v404 = vmax.f32 %v285, 0.0
  %v405 = vmax.f32 %v289, 0.0
  %v406 = vmax.f32 %v291, 0.0
  %v407 = vmax.f32 %v293, 0.0
  %v408 = vmax.f32 %v295, 0.0
  %v409 = vmax.f32 %v299, 0.0
  %v410 = vmax.f32 %v301, 0.0
  %v411 = vmax.f32 %v303, 0.0
  %v412 = vmax.f32 %v305, 0.0
  %v413 = vmax.f32 %v309, 0.0
  %v414 = vmax.f32 %v311, 0.0
  %v415 = vmax.f32 %v313, 0.0
  %v416 = vmax.f32 %v315, 0.0
  %v417 = vmax.f32 %v319, 0.0
  %v418 = vmax.f32 %v321, 0.0
  %v419 = vmax.f32 %v323, 0.0
  %v420 = vmax.f32 %v325, 0.0
  %v421 = vmax.f32 %v329, 0.0
  %v422 = vmax.f32 %v331, 0.0
  %v423 = vmax.f32 %v333, 0.0
  %v424 = vmax.f32 %v335, 0.0
  %v425 = vmax.f32 %v339, 0.0
  %v426 = vmax.f32 %v341, 0.0
  %v427 = vmax.f32 %v343, 0.0
  %v428 = vmax.f32 %v345, 0.0
  %v429 = vmax.f32 %v349, 0.0
  %v430 = vmax.f32 %v351, 0.0
  %v431 = vmax.f32 %v353, 0.0
  %v432 = vmax.f32 %v355, 0.0
  %v433 = vmax.f32 %v359, 0.0
  %v434 = vmax.f32 %v361, 0.0
  %v435 = vmax.f32 %v363, 0.0
  %v436 = vmax.f32 %v365, 0.0
  %v437 = vmax.f32 %v369, 0.0
  %v438 = vmax.f32 %v371, 0.0
  %v439 = vmax.f32 %v373, 0.0
  %v440 = vmax.f32 %v375, 0.0
  %v441 = vpack.c.bf16 %v379, %v377
  %v442 = vpack.c.bf16 %v380, %v378
  %v443 = vpack.c.bf16 %v383, %v381
  %v444 = vpack.c.bf16 %v384, %v382
  %v445 = vpack.c.bf16 %v387, %v385
  %v446 = vpack.c.bf16 %v388, %v386
  %v447 = vpack.c.bf16 %v391, %v389
  %v448 = vpack.c.bf16 %v392, %v390
  %v449 = vpack.c.bf16 %v395, %v393
  %v450 = vpack.c.bf16 %v396, %v394
  %v451 = vpack.c.bf16 %v399, %v397
  %v452 = vpack.c.bf16 %v400, %v398
  %v453 = vpack.c.bf16 %v403, %v401
  %v454 = vpack.c.bf16 %v404, %v402
  %v455 = vpack.c.bf16 %v407, %v405
  %v456 = vpack.c.bf16 %v408, %v406
  %v457 = vpack.c.bf16 %v411, %v409
  %v458 = vpack.c.bf16 %v412, %v410
  %v459 = vpack.c.bf16 %v415, %v413
  %v460 = vpack.c.bf16 %v416, %v414
  %v461 = vpack.c.bf16 %v419, %v417
  %v462 = vpack.c.bf16 %v420, %v418
  %v463 = vpack.c.bf16 %v423, %v421
  %v464 = vpack.c.bf16 %v424, %v422
  %v465 = vpack.c.bf16 %v427, %v425
  %v466 = vpack.c.bf16 %v428, %v426
  %v467 = vpack.c.bf16 %v431, %v429
  %v468 = vpack.c.bf16 %v432, %v430
  %v469 = vpack.c.bf16 %v435, %v433
  %v470 = vpack.c.bf16 %v436, %v434
  %v471 = vpack.c.bf16 %v439, %v437
  %v472 = vpack.c.bf16 %v440, %v438
  %v473 = vld [vmem:[%s3] sm:$0xf]
  %v474 = vld [vmem:[%s3 + $0x4] sm:$0xf]
  %v475 = vld [vmem:[%s3 + $0x8] sm:$0xf]
  %v476 = vld [vmem:[%s3 + $0xc] sm:$0xf]
  %v477 = vld [vmem:[%s3 + $0x10] sm:$0xf]
  %v478 = vld [vmem:[%s3 + $0x14] sm:$0xf]
  %v479 = vld [vmem:[%s3 + $0x18] sm:$0xf]
  %v480 = vld [vmem:[%s3 + $0x1c] sm:$0xf]
  %v481 = vld [vmem:[%s3 + $0x20] sm:$0xf]
  %v482 = vld [vmem:[%s3 + $0x24] sm:$0xf]
  %v483 = vld [vmem:[%s3 + $0x28] sm:$0xf]
  %v484 = vld [vmem:[%s3 + $0x2c] sm:$0xf]
  %v485 = vld [vmem:[%s3 + $0x30] sm:$0xf]
  %v486 = vld [vmem:[%s3 + $0x34] sm:$0xf]
  %v487 = vld [vmem:[%s3 + $0x38] sm:$0xf]
  %v488 = vld [vmem:[%s3 + $0x3c] sm:$0xf]
  %v489 = vld [vmem:[%s3 + $0x40] sm:$0xf]
  %v490 = vld [vmem:[%s3 + $0x44] sm:$0xf]
  %v491 = vld [vmem:[%s3 + $0x48] sm:$0xf]
  %v492 = vld [vmem:[%s3 + $0x4c] sm:$0xf]
  %v493 = vld [vmem:[%s3 + $0x50] sm:$0xf]
  %v494 = vld [vmem:[%s3 + $0x54] sm:$0xf]
  %v495 = vld [vmem:[%s3 + $0x58] sm:$0xf]
  %v496 = vld [vmem:[%s3 + $0x5c] sm:$0xf]
  %v497 = vld [vmem:[%s3 + $0x60] sm:$0xf]
  %v498 = vld [vmem:[%s3 + $0x64] sm:$0xf]
  %v499 = vld [vmem:[%s3 + $0x68] sm:$0xf]
  %v500 = vld [vmem:[%s3 + $0x6c] sm:$0xf]
  %v501 = vld [vmem:[%s3 + $0x70] sm:$0xf]
  %v502 = vld [vmem:[%s3 + $0x74] sm:$0xf]
  %v503 = vld [vmem:[%s3 + $0x78] sm:$0xf]
  %v504 = vld [vmem:[%s3 + $0x7c] sm:$0xf]
  %v505 = vld [vmem:[%s4] sm:$0x1]
  %v507 = vlaneseq
  %v508 = vshrl.u32 %v507, 7
  %v509 = vsub.s32 0, %v508
  %v510 = vrot.slane %v505, %v509
  %v544 = vunpack.c.l.b16 %v473
  %v545 = vunpack.c.l.b16 %v474
  %v546 = vunpack.c.l.b16 %v475
  %v547 = vunpack.c.l.b16 %v476
  %v548 = vunpack.c.l.b16 %v477
  %v549 = vunpack.c.l.b16 %v478
  %v550 = vunpack.c.l.b16 %v479
  %v551 = vunpack.c.l.b16 %v480
  %v552 = vunpack.c.l.b16 %v481
  %v553 = vunpack.c.l.b16 %v482
  %v554 = vunpack.c.l.b16 %v483
  %v555 = vunpack.c.l.b16 %v484
  %v556 = vunpack.c.l.b16 %v485
  %v557 = vunpack.c.l.b16 %v486
  %v558 = vunpack.c.l.b16 %v487
  %v559 = vunpack.c.l.b16 %v488
  %v560 = vunpack.c.l.b16 %v489
  %v561 = vunpack.c.l.b16 %v490
  %v562 = vunpack.c.l.b16 %v491
  %v563 = vunpack.c.l.b16 %v492
  %v564 = vunpack.c.l.b16 %v493
  %v565 = vunpack.c.l.b16 %v494
  %v566 = vunpack.c.l.b16 %v495
  %v567 = vunpack.c.l.b16 %v496
  %v568 = vunpack.c.l.b16 %v497
  %v569 = vunpack.c.l.b16 %v498
  %v570 = vunpack.c.l.b16 %v499
  %v571 = vunpack.c.l.b16 %v500
  %v572 = vunpack.c.l.b16 %v501
  %v573 = vunpack.c.l.b16 %v502
  %v574 = vunpack.c.l.b16 %v503
  %v575 = vunpack.c.l.b16 %v504
  %v576 = vpack.c.b16 %v545, %v544
  %v577 = vpack.c.b16 %v547, %v546
  %v578 = vpack.c.b16 %v549, %v548
  %v579 = vpack.c.b16 %v551, %v550
  %v580 = vpack.c.b16 %v553, %v552
  %v581 = vpack.c.b16 %v555, %v554
  %v582 = vpack.c.b16 %v557, %v556
  %v583 = vpack.c.b16 %v559, %v558
  %v584 = vpack.c.b16 %v561, %v560
  %v585 = vpack.c.b16 %v563, %v562
  %v586 = vpack.c.b16 %v565, %v564
  %v587 = vpack.c.b16 %v567, %v566
  %v588 = vpack.c.b16 %v569, %v568
  %v589 = vpack.c.b16 %v571, %v570
  %v590 = vpack.c.b16 %v573, %v572
  %v591 = vpack.c.b16 %v575, %v574
  %608 = vmatprep.subr.bf16.mxu0 0
  %609 = vmatpush1.bf16.msra.mxu0 %v583
  %610 = vmatprep.subr.bf16.mxu0 0
  %611 = vmatpush1.bf16.msra.mxu0 %v582
  %612 = vmatprep.subr.bf16.mxu0 0
  %613 = vmatpush1.bf16.msra.mxu0 %v581
  %614 = vmatprep.subr.bf16.mxu0 0
  %615 = vmatpush1.bf16.msra.mxu0 %v580
  %616 = vmatprep.subr.bf16.mxu0 0
  %617 = vmatpush1.bf16.msra.mxu0 %v579
  %618 = vmatprep.subr.bf16.mxu0 0
  %619 = vmatpush1.bf16.msra.mxu0 %v578
  %620 = vmatprep.subr.bf16.mxu0 0
  %621 = vmatpush1.bf16.msra.mxu0 %v577
  %622 = vmatprep.subr.bf16.mxu0 0
  %623 = vmatpush1.bf16.msra.mxu0 %v576
  %624 = vmatprep.subr.bf16.mxu0 0
  %625 = vmatpush2.bf16.msra.mxu0 %v591
  %626 = vmatprep.subr.bf16.mxu0 0
  %627 = vmatpush2.bf16.msra.mxu0 %v590
  %628 = vmatprep.subr.bf16.mxu0 0
  %629 = vmatpush2.bf16.msra.mxu0 %v589
  %630 = vmatprep.subr.bf16.mxu0 0
  %631 = vmatpush2.bf16.msra.mxu0 %v588
  %632 = vmatprep.subr.bf16.mxu0 0
  %633 = vmatpush2.bf16.msra.mxu0 %v587
  %634 = vmatprep.subr.bf16.mxu0 0
  %635 = vmatpush2.bf16.msra.mxu0 %v586
  %636 = vmatprep.subr.bf16.mxu0 0
  %637 = vmatpush2.bf16.msra.mxu0 %v585
  %638 = vmatprep.subr.bf16.mxu0 0
  %639 = vmatpush2.bf16.msra.mxu0 %v584
  %640 = vmatprep.mubr.bf16.mxu0 %v442
  %641 = vmatmul.mubr.bf16.gmra.mxu0 %v441
  %v642 = vpop.f32.mrf.mxu0
  %v643 = vadd.f32 %v510, %v642
  %v644 = vpop.f32.mrf.mxu0
  %v645 = vpop.f32.mrf.mxu0
  %v646 = vadd.f32 %v510, %v645
  %v647 = vpop.f32.mrf.mxu0
  %648 = vmatprep.mubr.bf16.mxu0 %v444
  %649 = vmatmul.mubr.bf16.gmra.mxu0 %v443
  %v650 = vpop.f32.mrf.mxu0
  %v651 = vadd.f32 %v510, %v650
  %v652 = vpop.f32.mrf.mxu0
  %v653 = vpop.f32.mrf.mxu0
  %v654 = vadd.f32 %v510, %v653
  %v655 = vpop.f32.mrf.mxu0
  %656 = vmatprep.mubr.bf16.mxu0 %v446
  %657 = vmatmul.mubr.bf16.gmra.mxu0 %v445
  %v658 = vpop.f32.mrf.mxu0
  %v659 = vadd.f32 %v510, %v658
  %v660 = vpop.f32.mrf.mxu0
  %v661 = vpop.f32.mrf.mxu0
  %v662 = vadd.f32 %v510, %v661
  %v663 = vpop.f32.mrf.mxu0
  %664 = vmatprep.mubr.bf16.mxu0 %v448
  %665 = vmatmul.mubr.bf16.gmra.mxu0 %v447
  %v666 = vpop.f32.mrf.mxu0
  %v667 = vadd.f32 %v510, %v666
  %v668 = vpop.f32.mrf.mxu0
  %v669 = vpop.f32.mrf.mxu0
  %v670 = vadd.f32 %v510, %v669
  %v671 = vpop.f32.mrf.mxu0
  %672 = vmatprep.mubr.bf16.mxu0 %v450
  %673 = vmatmul.mubr.bf16.gmra.mxu0 %v449
  %v674 = vpop.f32.mrf.mxu0
  %v675 = vadd.f32 %v510, %v674
  %v676 = vpop.f32.mrf.mxu0
  %v677 = vpop.f32.mrf.mxu0
  %v678 = vadd.f32 %v510, %v677
  %v679 = vpop.f32.mrf.mxu0
  %680 = vmatprep.mubr.bf16.mxu0 %v452
  %681 = vmatmul.mubr.bf16.gmra.mxu0 %v451
  %v682 = vpop.f32.mrf.mxu0
  %v683 = vadd.f32 %v510, %v682
  %v684 = vpop.f32.mrf.mxu0
  %v685 = vpop.f32.mrf.mxu0
  %v686 = vadd.f32 %v510, %v685
  %v687 = vpop.f32.mrf.mxu0
  %688 = vmatprep.mubr.bf16.mxu0 %v454
  %689 = vmatmul.mubr.bf16.gmra.mxu0 %v453
  %v690 = vpop.f32.mrf.mxu0
  %v691 = vadd.f32 %v510, %v690
  %v692 = vpop.f32.mrf.mxu0
  %v693 = vpop.f32.mrf.mxu0
  %v694 = vadd.f32 %v510, %v693
  %v695 = vpop.f32.mrf.mxu0
  %696 = vmatprep.mubr.bf16.mxu0 %v456
  %697 = vmatmul.mubr.bf16.gmra.mxu0 %v455
  %v698 = vpop.f32.mrf.mxu0
  %v699 = vadd.f32 %v510, %v698
  %v700 = vpop.f32.mrf.mxu0
  %v701 = vpop.f32.mrf.mxu0
  %v702 = vadd.f32 %v510, %v701
  %v703 = vpop.f32.mrf.mxu0
  %704 = vmatprep.mubr.bf16.mxu0 %v458
  %705 = vmatmul.mubr.bf16.gmra.mxu0 %v457
  %v706 = vpop.f32.mrf.mxu0
  %v707 = vadd.f32 %v510, %v706
  %v708 = vpop.f32.mrf.mxu0
  %v709 = vpop.f32.mrf.mxu0
  %v710 = vadd.f32 %v510, %v709
  %v711 = vpop.f32.mrf.mxu0
  %712 = vmatprep.mubr.bf16.mxu0 %v460
  %713 = vmatmul.mubr.bf16.gmra.mxu0 %v459
  %v714 = vpop.f32.mrf.mxu0
  %v715 = vadd.f32 %v510, %v714
  %v716 = vpop.f32.mrf.mxu0
  %v717 = vpop.f32.mrf.mxu0
  %v718 = vadd.f32 %v510, %v717
  %v719 = vpop.f32.mrf.mxu0
  %720 = vmatprep.mubr.bf16.mxu0 %v462
  %721 = vmatmul.mubr.bf16.gmra.mxu0 %v461
  %v722 = vpop.f32.mrf.mxu0
  %v723 = vadd.f32 %v510, %v722
  %v724 = vpop.f32.mrf.mxu0
  %v725 = vpop.f32.mrf.mxu0
  %v726 = vadd.f32 %v510, %v725
  %v727 = vpop.f32.mrf.mxu0
  %728 = vmatprep.mubr.bf16.mxu0 %v464
  %729 = vmatmul.mubr.bf16.gmra.mxu0 %v463
  %v730 = vpop.f32.mrf.mxu0
  %v731 = vadd.f32 %v510, %v730
  %v732 = vpop.f32.mrf.mxu0
  %v733 = vpop.f32.mrf.mxu0
  %v734 = vadd.f32 %v510, %v733
  %v735 = vpop.f32.mrf.mxu0
  %736 = vmatprep.mubr.bf16.mxu0 %v466
  %737 = vmatmul.mubr.bf16.gmra.mxu0 %v465
  %v738 = vpop.f32.mrf.mxu0
  %v739 = vadd.f32 %v510, %v738
  %v740 = vpop.f32.mrf.mxu0
  %v741 = vpop.f32.mrf.mxu0
  %v742 = vadd.f32 %v510, %v741
  %v743 = vpop.f32.mrf.mxu0
  %744 = vmatprep.mubr.bf16.mxu0 %v468
  %745 = vmatmul.mubr.bf16.gmra.mxu0 %v467
  %v746 = vpop.f32.mrf.mxu0
  %v747 = vadd.f32 %v510, %v746
  %v748 = vpop.f32.mrf.mxu0
  %v749 = vpop.f32.mrf.mxu0
  %v750 = vadd.f32 %v510, %v749
  %v751 = vpop.f32.mrf.mxu0
  %752 = vmatprep.mubr.bf16.mxu0 %v470
  %753 = vmatmul.mubr.bf16.gmra.mxu0 %v469
  %v754 = vpop.f32.mrf.mxu0
  %v755 = vadd.f32 %v510, %v754
  %v756 = vpop.f32.mrf.mxu0
  %v757 = vpop.f32.mrf.mxu0
  %v758 = vadd.f32 %v510, %v757
  %v759 = vpop.f32.mrf.mxu0
  %760 = vmatprep.mubr.bf16.mxu0 %v472
  %761 = vmatmul.mubr.bf16.gmra.mxu0 %v471
  %v762 = vpop.f32.mrf.mxu0
  %v763 = vadd.f32 %v510, %v762
  %v764 = vpop.f32.mrf.mxu0
  %v765 = vpop.f32.mrf.mxu0
  %v766 = vadd.f32 %v510, %v765
  %v767 = vpop.f32.mrf.mxu0
  %768 = vdwg.mxu0
  %v769 = vmax.f32 %v643, 0.0
  %v770 = vmax.f32 %v646, 0.0
  %v771 = vmax.f32 %v651, 0.0
  %v772 = vmax.f32 %v654, 0.0
  %v773 = vmax.f32 %v659, 0.0
  %v774 = vmax.f32 %v662, 0.0
  %v775 = vmax.f32 %v667, 0.0
  %v776 = vmax.f32 %v670, 0.0
  %v777 = vmax.f32 %v675, 0.0
  %v778 = vmax.f32 %v678, 0.0
  %v779 = vmax.f32 %v683, 0.0
  %v780 = vmax.f32 %v686, 0.0
  %v781 = vmax.f32 %v691, 0.0
  %v782 = vmax.f32 %v694, 0.0
  %v783 = vmax.f32 %v699, 0.0
  %v784 = vmax.f32 %v702, 0.0
  %v785 = vmax.f32 %v707, 0.0
  %v786 = vmax.f32 %v710, 0.0
  %v787 = vmax.f32 %v715, 0.0
  %v788 = vmax.f32 %v718, 0.0
  %v789 = vmax.f32 %v723, 0.0
  %v790 = vmax.f32 %v726, 0.0
  %v791 = vmax.f32 %v731, 0.0
  %v792 = vmax.f32 %v734, 0.0
  %v793 = vmax.f32 %v739, 0.0
  %v794 = vmax.f32 %v742, 0.0
  %v795 = vmax.f32 %v747, 0.0
  %v796 = vmax.f32 %v750, 0.0
  %v797 = vmax.f32 %v755, 0.0
  %v798 = vmax.f32 %v758, 0.0
  %v799 = vmax.f32 %v763, 0.0
  %v800 = vmax.f32 %v766, 0.0
  %v801 = vpack.c.bf16 %v770, %v769
  %v802 = vpack.c.bf16 %v772, %v771
  %v803 = vpack.c.bf16 %v774, %v773
  %v804 = vpack.c.bf16 %v776, %v775
  %v805 = vpack.c.bf16 %v778, %v777
  %v806 = vpack.c.bf16 %v780, %v779
  %v807 = vpack.c.bf16 %v782, %v781
  %v808 = vpack.c.bf16 %v784, %v783
  %v809 = vpack.c.bf16 %v786, %v785
  %v810 = vpack.c.bf16 %v788, %v787
  %v811 = vpack.c.bf16 %v790, %v789
  %v812 = vpack.c.bf16 %v792, %v791
  %v813 = vpack.c.bf16 %v794, %v793
  %v814 = vpack.c.bf16 %v796, %v795
  %v815 = vpack.c.bf16 %v798, %v797
  %v816 = vpack.c.bf16 %v800, %v799
  %v817 = vld [vmem:[%s5] sm:$0xf]
  %v818 = vld [vmem:[%s5 + $0x4] sm:$0xf]
  %v819 = vld [vmem:[%s5 + $0x8] sm:$0xf]
  %v820 = vld [vmem:[%s5 + $0xc] sm:$0xf]
  %v821 = vld [vmem:[%s5 + $0x10] sm:$0xf]
  %v822 = vld [vmem:[%s5 + $0x14] sm:$0xf]
  %v823 = vld [vmem:[%s5 + $0x18] sm:$0xf]
  %v824 = vld [vmem:[%s5 + $0x1c] sm:$0xf]
  %v825 = vld [vmem:[%s5 + $0x20] sm:$0xf]
  %v826 = vld [vmem:[%s5 + $0x24] sm:$0xf]
  %v827 = vld [vmem:[%s5 + $0x28] sm:$0xf]
  %v828 = vld [vmem:[%s5 + $0x2c] sm:$0xf]
  %v829 = vld [vmem:[%s5 + $0x30] sm:$0xf]
  %v830 = vld [vmem:[%s5 + $0x34] sm:$0xf]
  %v831 = vld [vmem:[%s5 + $0x38] sm:$0xf]
  %v832 = vld [vmem:[%s5 + $0x3c] sm:$0xf]
  %v833 = vld [vmem:[%s6] sm:$0x1]
  %v835 = vlaneseq
  %v836 = vshrl.u32 %v835, 7
  %v837 = vsub.s32 0, %v836
  %v838 = vrot.slane %v833, %v837
  %v856 = vunpack.c.l.b16 %v817
  %v857 = vunpack.c.l.b16 %v818
  %v858 = vunpack.c.l.b16 %v819
  %v859 = vunpack.c.l.b16 %v820
  %v860 = vunpack.c.l.b16 %v821
  %v861 = vunpack.c.l.b16 %v822
  %v862 = vunpack.c.l.b16 %v823
  %v863 = vunpack.c.l.b16 %v824
  %v864 = vunpack.c.l.b16 %v825
  %v865 = vunpack.c.l.b16 %v826
  %v866 = vunpack.c.l.b16 %v827
  %v867 = vunpack.c.l.b16 %v828
  %v868 = vunpack.c.l.b16 %v829
  %v869 = vunpack.c.l.b16 %v830
  %v870 = vunpack.c.l.b16 %v831
  %v871 = vunpack.c.l.b16 %v832
  %v872 = vpack.c.b16 %v857, %v856
  %v873 = vpack.c.b16 %v859, %v858
  %v874 = vpack.c.b16 %v861, %v860
  %v875 = vpack.c.b16 %v863, %v862
  %v876 = vpack.c.b16 %v865, %v864
  %v877 = vpack.c.b16 %v867, %v866
  %v878 = vpack.c.b16 %v869, %v868
  %v879 = vpack.c.b16 %v871, %v870
  %888 = vmatprep.subr.bf16.mxu0 0
  %889 = vmatpush1.bf16.msra.mxu0 %v879
  %890 = vmatprep.subr.bf16.mxu0 0
  %891 = vmatpush1.bf16.msra.mxu0 %v878
  %892 = vmatprep.subr.bf16.mxu0 0
  %893 = vmatpush1.bf16.msra.mxu0 %v877
  %894 = vmatprep.subr.bf16.mxu0 0
  %895 = vmatpush1.bf16.msra.mxu0 %v876
  %896 = vmatprep.subr.bf16.mxu0 0
  %897 = vmatpush1.bf16.msra.mxu0 %v875
  %898 = vmatprep.subr.bf16.mxu0 0
  %899 = vmatpush1.bf16.msra.mxu0 %v874
  %900 = vmatprep.subr.bf16.mxu0 0
  %901 = vmatpush1.bf16.msra.mxu0 %v873
  %902 = vmatprep.subr.bf16.mxu0 0
  %903 = vmatpush1.bf16.msra.mxu0 %v872
  %904 = vmatprep.subr.bf16.mxu0 0
  %905 = vmatpush2.bf16.msra.mxu0 0
  %906 = vmatprep.subr.bf16.mxu0 0
  %907 = vmatpush2.bf16.msra.mxu0 0
  %908 = vmatprep.subr.bf16.mxu0 0
  %909 = vmatpush2.bf16.msra.mxu0 0
  %910 = vmatprep.subr.bf16.mxu0 0
  %911 = vmatpush2.bf16.msra.mxu0 0
  %912 = vmatprep.subr.bf16.mxu0 0
  %913 = vmatpush2.bf16.msra.mxu0 0
  %914 = vmatprep.subr.bf16.mxu0 0
  %915 = vmatpush2.bf16.msra.mxu0 0
  %916 = vmatprep.subr.bf16.mxu0 0
  %917 = vmatpush2.bf16.msra.mxu0 0
  %918 = vmatprep.subr.bf16.mxu0 0
  %919 = vmatpush2.bf16.msra.mxu0 0
  %920 = vmatprep.mubr.bf16.mxu0 0
  %921 = vmatmul.mubr.bf16.gmra.mxu0 %v801
  %v922 = vpop.f32.mrf.mxu0
  %v923 = vadd.f32 %v838, %v922
  %v924 = vpop.f32.mrf.mxu0
  %v925 = vpop.f32.mrf.mxu0
  %v926 = vadd.f32 %v838, %v925
  %v927 = vpop.f32.mrf.mxu0
  %928 = vmatprep.mubr.bf16.mxu0 0
  %929 = vmatmul.mubr.bf16.gmra.mxu0 %v802
  %v930 = vpop.f32.mrf.mxu0
  %v931 = vadd.f32 %v838, %v930
  %v932 = vpop.f32.mrf.mxu0
  %v933 = vpop.f32.mrf.mxu0
  %v934 = vadd.f32 %v838, %v933
  %v935 = vpop.f32.mrf.mxu0
  %936 = vmatprep.mubr.bf16.mxu0 0
  %937 = vmatmul.mubr.bf16.gmra.mxu0 %v803
  %v938 = vpop.f32.mrf.mxu0
  %v939 = vadd.f32 %v838, %v938
  %v940 = vpop.f32.mrf.mxu0
  %v941 = vpop.f32.mrf.mxu0
  %v942 = vadd.f32 %v838, %v941
  %v943 = vpop.f32.mrf.mxu0
  %944 = vmatprep.mubr.bf16.mxu0 0
  %945 = vmatmul.mubr.bf16.gmra.mxu0 %v804
  %v946 = vpop.f32.mrf.mxu0
  %v947 = vadd.f32 %v838, %v946
  %v948 = vpop.f32.mrf.mxu0
  %v949 = vpop.f32.mrf.mxu0
  %v950 = vadd.f32 %v838, %v949
  %v951 = vpop.f32.mrf.mxu0
  %952 = vmatprep.mubr.bf16.mxu0 0
  %953 = vmatmul.mubr.bf16.gmra.mxu0 %v805
  %v954 = vpop.f32.mrf.mxu0
  %v955 = vadd.f32 %v838, %v954
  %v956 = vpop.f32.mrf.mxu0
  %v957 = vpop.f32.mrf.mxu0
  %v958 = vadd.f32 %v838, %v957
  %v959 = vpop.f32.mrf.mxu0
  %960 = vmatprep.mubr.bf16.mxu0 0
  %961 = vmatmul.mubr.bf16.gmra.mxu0 %v806
  %v962 = vpop.f32.mrf.mxu0
  %v963 = vadd.f32 %v838, %v962
  %v964 = vpop.f32.mrf.mxu0
  %v965 = vpop.f32.mrf.mxu0
  %v966 = vadd.f32 %v838, %v965
  %v967 = vpop.f32.mrf.mxu0
  %968 = vmatprep.mubr.bf16.mxu0 0
  %969 = vmatmul.mubr.bf16.gmra.mxu0 %v807
  %v970 = vpop.f32.mrf.mxu0
  %v971 = vadd.f32 %v838, %v970
  %v972 = vpop.f32.mrf.mxu0
  %v973 = vpop.f32.mrf.mxu0
  %v974 = vadd.f32 %v838, %v973
  %v975 = vpop.f32.mrf.mxu0
  %976 = vmatprep.mubr.bf16.mxu0 0
  %977 = vmatmul.mubr.bf16.gmra.mxu0 %v808
  %v978 = vpop.f32.mrf.mxu0
  %v979 = vadd.f32 %v838, %v978
  %v980 = vpop.f32.mrf.mxu0
  %v981 = vpop.f32.mrf.mxu0
  %v982 = vadd.f32 %v838, %v981
  %v983 = vpop.f32.mrf.mxu0
  %984 = vmatprep.mubr.bf16.mxu0 0
  %985 = vmatmul.mubr.bf16.gmra.mxu0 %v809
  %v986 = vpop.f32.mrf.mxu0
  %v987 = vadd.f32 %v838, %v986
  %v988 = vpop.f32.mrf.mxu0
  %v989 = vpop.f32.mrf.mxu0
  %v990 = vadd.f32 %v838, %v989
  %v991 = vpop.f32.mrf.mxu0
  %992 = vmatprep.mubr.bf16.mxu0 0
  %993 = vmatmul.mubr.bf16.gmra.mxu0 %v810
  %v994 = vpop.f32.mrf.mxu0
  %v995 = vadd.f32 %v838, %v994
  %v996 = vpop.f32.mrf.mxu0
  %v997 = vpop.f32.mrf.mxu0
  %v998 = vadd.f32 %v838, %v997
  %v999 = vpop.f32.mrf.mxu0
  %1000 = vmatprep.mubr.bf16.mxu0 0
  %1001 = vmatmul.mubr.bf16.gmra.mxu0 %v811
  %v1002 = vpop.f32.mrf.mxu0
  %v1003 = vadd.f32 %v838, %v1002
  %v1004 = vpop.f32.mrf.mxu0
  %v1005 = vpop.f32.mrf.mxu0
  %v1006 = vadd.f32 %v838, %v1005
  %v1007 = vpop.f32.mrf.mxu0
  %1008 = vmatprep.mubr.bf16.mxu0 0
  %1009 = vmatmul.mubr.bf16.gmra.mxu0 %v812
  %v1010 = vpop.f32.mrf.mxu0
  %v1011 = vadd.f32 %v838, %v1010
  %v1012 = vpop.f32.mrf.mxu0
  %v1013 = vpop.f32.mrf.mxu0
  %v1014 = vadd.f32 %v838, %v1013
  %v1015 = vpop.f32.mrf.mxu0
  %1016 = vmatprep.mubr.bf16.mxu0 0
  %1017 = vmatmul.mubr.bf16.gmra.mxu0 %v813
  %v1018 = vpop.f32.mrf.mxu0
  %v1019 = vadd.f32 %v838, %v1018
  %v1020 = vpop.f32.mrf.mxu0
  %v1021 = vpop.f32.mrf.mxu0
  %v1022 = vadd.f32 %v838, %v1021
  %v1023 = vpop.f32.mrf.mxu0
  %1024 = vmatprep.mubr.bf16.mxu0 0
  %1025 = vmatmul.mubr.bf16.gmra.mxu0 %v814
  %v1026 = vpop.f32.mrf.mxu0
  %v1027 = vadd.f32 %v838, %v1026
  %v1028 = vpop.f32.mrf.mxu0
  %v1029 = vpop.f32.mrf.mxu0
  %v1030 = vadd.f32 %v838, %v1029
  %v1031 = vpop.f32.mrf.mxu0
  %1032 = vmatprep.mubr.bf16.mxu0 0
  %1033 = vmatmul.mubr.bf16.gmra.mxu0 %v815
  %v1034 = vpop.f32.mrf.mxu0
  %v1035 = vadd.f32 %v838, %v1034
  %v1036 = vpop.f32.mrf.mxu0
  %v1037 = vpop.f32.mrf.mxu0
  %v1038 = vadd.f32 %v838, %v1037
  %v1039 = vpop.f32.mrf.mxu0
  %1040 = vmatprep.mubr.bf16.mxu0 0
  %1041 = vmatmul.mubr.bf16.gmra.mxu0 %v816
  %v1042 = vpop.f32.mrf.mxu0
  %v1043 = vadd.f32 %v838, %v1042
  %v1044 = vpop.f32.mrf.mxu0
  %v1045 = vpop.f32.mrf.mxu0
  %v1046 = vadd.f32 %v838, %v1045
  %v1047 = vpop.f32.mrf.mxu0
  %1048 = vdwg.mxu0
  %vm1049 = vcmask 80896
  %1050 = vst.msk [vmem:[%s7] sm:$0xff] %vm1049, %v923
  %1051 = vst.msk [vmem:[%s7 + $0x8] sm:$0xff] %vm1049, %v926
  %1052 = vst.msk [vmem:[%s7 + $0x10] sm:$0xff] %vm1049, %v931
  %1053 = vst.msk [vmem:[%s7 + $0x18] sm:$0xff] %vm1049, %v934
  %1054 = vst.msk [vmem:[%s7 + $0x20] sm:$0xff] %vm1049, %v939
  %1055 = vst.msk [vmem:[%s7 + $0x28] sm:$0xff] %vm1049, %v942
  %1056 = vst.msk [vmem:[%s7 + $0x30] sm:$0xff] %vm1049, %v947
  %1057 = vst.msk [vmem:[%s7 + $0x38] sm:$0xff] %vm1049, %v950
  %1058 = vst.msk [vmem:[%s7 + $0x40] sm:$0xff] %vm1049, %v955
  %1059 = vst.msk [vmem:[%s7 + $0x48] sm:$0xff] %vm1049, %v958
  %1060 = vst.msk [vmem:[%s7 + $0x50] sm:$0xff] %vm1049, %v963
  %1061 = vst.msk [vmem:[%s7 + $0x58] sm:$0xff] %vm1049, %v966
  %1062 = vst.msk [vmem:[%s7 + $0x60] sm:$0xff] %vm1049, %v971
  %1063 = vst.msk [vmem:[%s7 + $0x68] sm:$0xff] %vm1049, %v974
  %1064 = vst.msk [vmem:[%s7 + $0x70] sm:$0xff] %vm1049, %v979
  %1065 = vst.msk [vmem:[%s7 + $0x78] sm:$0xff] %vm1049, %v982
  %1066 = vst.msk [vmem:[%s7 + $0x80] sm:$0xff] %vm1049, %v987
  %1067 = vst.msk [vmem:[%s7 + $0x88] sm:$0xff] %vm1049, %v990
  %1068 = vst.msk [vmem:[%s7 + $0x90] sm:$0xff] %vm1049, %v995
  %1069 = vst.msk [vmem:[%s7 + $0x98] sm:$0xff] %vm1049, %v998
  %1070 = vst.msk [vmem:[%s7 + $0xa0] sm:$0xff] %vm1049, %v1003
  %1071 = vst.msk [vmem:[%s7 + $0xa8] sm:$0xff] %vm1049, %v1006
  %1072 = vst.msk [vmem:[%s7 + $0xb0] sm:$0xff] %vm1049, %v1011
  %1073 = vst.msk [vmem:[%s7 + $0xb8] sm:$0xff] %vm1049, %v1014
  %1074 = vst.msk [vmem:[%s7 + $0xc0] sm:$0xff] %vm1049, %v1019
  %1075 = vst.msk [vmem:[%s7 + $0xc8] sm:$0xff] %vm1049, %v1022
  %1076 = vst.msk [vmem:[%s7 + $0xd0] sm:$0xff] %vm1049, %v1027
  %1077 = vst.msk [vmem:[%s7 + $0xd8] sm:$0xff] %vm1049, %v1030
  %1078 = vst.msk [vmem:[%s7 + $0xe0] sm:$0xff] %vm1049, %v1035
  %1079 = vst.msk [vmem:[%s7 + $0xe8] sm:$0xff] %vm1049, %v1038
  %1080 = vst.msk [vmem:[%s7 + $0xf0] sm:$0xff] %vm1049, %v1043
  %1081 = vst.msk [vmem:[%s7 + $0xf8] sm:$0xff] %vm1049, %v1046
  // Predicated region
  $region30: #{tpu_custom_call.1} parent=0 // pred_check
    _
  $region31: #{tpu_custom_call.1} parent=0 // pred_check_branch
    %1083 = sbr.rel (0) target = $region33
  $region32: #{tpu_custom_call.1} parent=0 // pred_region
    _
  $region33: #{tpu_custom_call.1} parent=0 // pred_fallthru
    _
  // Predicated region
  $region34: #{tpu_custom_call.1} parent=0 // pred_check
    _
  $region35: #{tpu_custom_call.1} parent=0 // pred_check_branch
    %1085 = sbr.rel (0) target = $region37
  $region36: #{tpu_custom_call.1} parent=0 // pred_region
    _
  $region37: #{tpu_custom_call.1} parent=0 // pred_fallthru
    _

</llo_original>
